<compile_context>
chip_gen: v5e
topology: v5e:2x2
jax: 0.10.0
libtpu: 0.0.40
codegen_flags: <defaults>
</compile_context>

<pallas_src>
import jax
import jax.numpy as jnp
from jax.experimental import pallas as pl
from jax.experimental.pallas import tpu as pltpu


def _embed_kernel(ids_ref, tok_hbm, pos_ref, out_ref, gathered, sems):
    """One grid step produces one (TILE_S, D) output tile.

    ids_ref : SMEM (N*S,) int32        -- scalar-prefetched, flattened token ids
    tok_hbm : HBM  (V, D) float32      -- token embedding table (NOT in VMEM)
    pos_ref : VMEM (TILE_S, D) float32 -- position rows for this seq tile
    out_ref : VMEM (TILE_S, D) float32 -- output tile
    gathered: VMEM (TILE_S, D) float32 -- scratch for gathered token rows
    sems    : DMA semaphores (TILE_S,)
    """
    b = pl.program_id(0)
    j = pl.program_id(1)
    tile_s, _ = out_ref.shape
    seq_len = pl.num_programs(1) * tile_s
    base = b * seq_len + j * tile_s

    # Issue all row-gather DMAs first so they run concurrently.
    # (tile_s is small/static; unrolled issue loop keeps LLO scheduling simple.)
    # NOTE: ids are assumed in-range [0, V), same contract as nn.Embedding.
    for r in range(tile_s):
        tid = ids_ref[base + r]
        pltpu.make_async_copy(tok_hbm.at[tid], gathered.at[r], sems.at[r]).start()
    for r in range(tile_s):
        pltpu.make_async_copy(tok_hbm.at[0], gathered.at[r], sems.at[r]).wait()

    # Single dense VPU add + single dense (TILE_S, D) store.
    out_ref[...] = gathered[...] + pos_ref[...]


def token_and_position_embedding(ids, tok_table, pos_table, *, tile_s=None):
    """ids: (N, S) int32; tok_table: (V, D); pos_table: (L, D) with L >= S."""
    N, S = ids.shape
    V, D = tok_table.shape
    L, _ = pos_table.shape
    assert L >= S, "max_length must be >= seq_len"

    if tile_s is None:
        tile_s = S if S <= 128 else 128
    assert S % tile_s == 0, "seq_len must be divisible by the seq tile size"
    n_tiles = S // tile_s

    ids_flat = ids.reshape(N * S).astype(jnp.int32)   # 1-D SMEM prefetch operand
    pos_used = pos_table[:S]                          # only first S rows are read

    itemsize = jnp.dtype(tok_table.dtype).itemsize
    cost = pl.CostEstimate(
        flops=N * S * D,                              # one add per output element
        transcendentals=0,
        bytes_accessed=3 * N * S * D * itemsize + N * S * 4,
    )

    return pl.pallas_call(
        _embed_kernel,
        out_shape=jax.ShapeDtypeStruct((N, S, D), tok_table.dtype),
        grid_spec=pltpu.PrefetchScalarGridSpec(
            num_scalar_prefetch=1,                    # token ids land in SMEM
            grid=(N, n_tiles),
            in_specs=[
                # Token table stays in HBM; rows are DMA-gathered manually.
                pl.BlockSpec(memory_space=pl.ANY),
                # Position rows for seq tile j: dense, auto-pipelined.
                pl.BlockSpec((tile_s, D), lambda b, j, ids: (j, 0)),
            ],
            out_specs=pl.BlockSpec((None, tile_s, D), lambda b, j, ids: (b, j, 0)),
            scratch_shapes=[
                pltpu.VMEM((tile_s, D), tok_table.dtype),
                pltpu.SemaphoreType.DMA((tile_s,)),
            ],
        ),
        compiler_params=pltpu.CompilerParams(
            dimension_semantics=("parallel", "parallel")),
        cost_estimate=cost,
    )(ids_flat, tok_table, pos_used)


if __name__ == "__main__":
    # Small, deterministic configuration consistent with the module.
    batch = 2
    seq_len = 8
    embed_dim = 128     # lane-dense last dim (multiple of 128)
    vocab_size = 64
    max_length = 16

    key = jax.random.PRNGKey(0)
    k_tok, k_pos, k_ids = jax.random.split(key, 3)

    # nn.Embedding weights ~ N(0, 1) by default; init deterministically here.
    tok_table = jax.random.normal(k_tok, (vocab_size, embed_dim), dtype=jnp.float32)
    pos_table = jax.random.normal(k_pos, (max_length, embed_dim), dtype=jnp.float32)

    ids = jax.random.randint(k_ids, (batch, seq_len), 0, vocab_size, dtype=jnp.int32)

    out = token_and_position_embedding(ids, tok_table, pos_table)
    out = jax.block_until_ready(out)

    # Pure-JAX reference (same semantics as the PyTorch forward).
    ref = tok_table[ids] + pos_table[jnp.arange(seq_len)][None, :, :]
    assert out.shape == (batch, seq_len, embed_dim)
    assert jnp.allclose(out, ref, atol=1e-6), "mismatch vs reference"

    print("KERNEL_OK")
</pallas_src>

<mosaic_0001>
module attributes {stable_mosaic.version = 11 : i64} {
  func.func @_embed_kernel(%arg0: i32, %arg1: i32, %arg2: memref<16xi32, #tpu.memory_space<smem>>, %arg3: memref<64x128xf32, #tpu.memory_space<any>>, %arg4: memref<8x128xf32, #tpu.memory_space<vmem>>, %arg5: memref<1x8x128xf32, #tpu.memory_space<vmem>>, %arg6: memref<8x128xf32, #tpu.memory_space<vmem>>, %arg7: memref<8x!tpu.dma_semaphore, #tpu.memory_space<semaphore_mem>>) attributes {dimension_semantics = [#tpu.dimension_semantics<parallel>, #tpu.dimension_semantics<parallel>], iteration_bounds = array<i64: 2, 1>, scalar_prefetch = 1 : i64, scratch_operands = 2 : i64, tpu.core_type = #tpu.core_type<tc>, window_params = [{}, {transform_indices = @transform_1, window_bounds = array<i64: 8, 128>}, {transform_indices = @transform_2, window_bounds = array<i64: 1, 8, 128>}]} {
    %c8_i32 = arith.constant 8 : i32
    %0 = arith.muli %arg0, %c8_i32 : i32
    %c8_i32_0 = arith.constant 8 : i32
    %1 = arith.muli %arg1, %c8_i32_0 : i32
    %2 = arith.addi %0, %1 : i32
    %c0_i32 = arith.constant 0 : i32
    %3 = arith.addi %2, %c0_i32 : i32
    %4 = arith.index_cast %3 : i32 to index
    %5 = memref.load %arg2[%4] : memref<16xi32, #tpu.memory_space<smem>>
    %c0_i32_1 = arith.constant 0 : i32
    %c0_i32_2 = arith.constant 0 : i32
    %c0_i32_3 = arith.constant 0 : i32
    %6 = tpu.memref_slice %arg3[%5, %c0_i32_3] : memref<64x128xf32, #tpu.memory_space<any>> -> memref<1x128xf32, #tpu.memory_space<any>>
    %7 = tpu.memref_squeeze %6 : memref<1x128xf32, #tpu.memory_space<any>> -> memref<128xf32, #tpu.memory_space<any>>
    %c0_i32_4 = arith.constant 0 : i32
    %8 = tpu.memref_slice %arg6[%c0_i32_1, %c0_i32_4] : memref<8x128xf32, #tpu.memory_space<vmem>> -> memref<1x128xf32, #tpu.memory_space<vmem>>
    %9 = tpu.memref_squeeze %8 : memref<1x128xf32, #tpu.memory_space<vmem>> -> memref<128xf32, #tpu.memory_space<vmem>>
    %10 = tpu.memref_slice %arg7[%c0_i32_2] : memref<8x!tpu.dma_semaphore, #tpu.memory_space<semaphore_mem>> -> memref<1x!tpu.dma_semaphore, #tpu.memory_space<semaphore_mem>>
    %11 = tpu.memref_squeeze %10 : memref<1x!tpu.dma_semaphore, #tpu.memory_space<semaphore_mem>> -> memref<!tpu.dma_semaphore, #tpu.memory_space<semaphore_mem>>
    tpu.enqueue_dma source(%7 : memref<128xf32, #tpu.memory_space<any>>) target(%9 : memref<128xf32, #tpu.memory_space<vmem>>) target_semaphore(%11 : memref<!tpu.dma_semaphore, #tpu.memory_space<semaphore_mem>>)
    %c1_i32 = arith.constant 1 : i32
    %12 = arith.addi %2, %c1_i32 : i32
    %13 = arith.index_cast %12 : i32 to index
    %14 = memref.load %arg2[%13] : memref<16xi32, #tpu.memory_space<smem>>
    %c1_i32_5 = arith.constant 1 : i32
    %c1_i32_6 = arith.constant 1 : i32
    %c0_i32_7 = arith.constant 0 : i32
    %15 = tpu.memref_slice %arg3[%14, %c0_i32_7] : memref<64x128xf32, #tpu.memory_space<any>> -> memref<1x128xf32, #tpu.memory_space<any>>
    %16 = tpu.memref_squeeze %15 : memref<1x128xf32, #tpu.memory_space<any>> -> memref<128xf32, #tpu.memory_space<any>>
    %c0_i32_8 = arith.constant 0 : i32
    %17 = tpu.memref_slice %arg6[%c1_i32_5, %c0_i32_8] : memref<8x128xf32, #tpu.memory_space<vmem>> -> memref<1x128xf32, #tpu.memory_space<vmem>>
    %18 = tpu.memref_squeeze %17 : memref<1x128xf32, #tpu.memory_space<vmem>> -> memref<128xf32, #tpu.memory_space<vmem>>
    %19 = tpu.memref_slice %arg7[%c1_i32_6] : memref<8x!tpu.dma_semaphore, #tpu.memory_space<semaphore_mem>> -> memref<1x!tpu.dma_semaphore, #tpu.memory_space<semaphore_mem>>
    %20 = tpu.memref_squeeze %19 : memref<1x!tpu.dma_semaphore, #tpu.memory_space<semaphore_mem>> -> memref<!tpu.dma_semaphore, #tpu.memory_space<semaphore_mem>>
    tpu.enqueue_dma source(%16 : memref<128xf32, #tpu.memory_space<any>>) target(%18 : memref<128xf32, #tpu.memory_space<vmem>>) target_semaphore(%20 : memref<!tpu.dma_semaphore, #tpu.memory_space<semaphore_mem>>)
    %c2_i32 = arith.constant 2 : i32
    %21 = arith.addi %2, %c2_i32 : i32
    %22 = arith.index_cast %21 : i32 to index
    %23 = memref.load %arg2[%22] : memref<16xi32, #tpu.memory_space<smem>>
    %c2_i32_9 = arith.constant 2 : i32
    %c2_i32_10 = arith.constant 2 : i32
    %c0_i32_11 = arith.constant 0 : i32
    %24 = tpu.memref_slice %arg3[%23, %c0_i32_11] : memref<64x128xf32, #tpu.memory_space<any>> -> memref<1x128xf32, #tpu.memory_space<any>>
    %25 = tpu.memref_squeeze %24 : memref<1x128xf32, #tpu.memory_space<any>> -> memref<128xf32, #tpu.memory_space<any>>
    %c0_i32_12 = arith.constant 0 : i32
    %26 = tpu.memref_slice %arg6[%c2_i32_9, %c0_i32_12] : memref<8x128xf32, #tpu.memory_space<vmem>> -> memref<1x128xf32, #tpu.memory_space<vmem>>
    %27 = tpu.memref_squeeze %26 : memref<1x128xf32, #tpu.memory_space<vmem>> -> memref<128xf32, #tpu.memory_space<vmem>>
    %28 = tpu.memref_slice %arg7[%c2_i32_10] : memref<8x!tpu.dma_semaphore, #tpu.memory_space<semaphore_mem>> -> memref<1x!tpu.dma_semaphore, #tpu.memory_space<semaphore_mem>>
    %29 = tpu.memref_squeeze %28 : memref<1x!tpu.dma_semaphore, #tpu.memory_space<semaphore_mem>> -> memref<!tpu.dma_semaphore, #tpu.memory_space<semaphore_mem>>
    tpu.enqueue_dma source(%25 : memref<128xf32, #tpu.memory_space<any>>) target(%27 : memref<128xf32, #tpu.memory_space<vmem>>) target_semaphore(%29 : memref<!tpu.dma_semaphore, #tpu.memory_space<semaphore_mem>>)
    %c3_i32 = arith.constant 3 : i32
    %30 = arith.addi %2, %c3_i32 : i32
    %31 = arith.index_cast %30 : i32 to index
    %32 = memref.load %arg2[%31] : memref<16xi32, #tpu.memory_space<smem>>
    %c3_i32_13 = arith.constant 3 : i32
    %c3_i32_14 = arith.constant 3 : i32
    %c0_i32_15 = arith.constant 0 : i32
    %33 = tpu.memref_slice %arg3[%32, %c0_i32_15] : memref<64x128xf32, #tpu.memory_space<any>> -> memref<1x128xf32, #tpu.memory_space<any>>
    %34 = tpu.memref_squeeze %33 : memref<1x128xf32, #tpu.memory_space<any>> -> memref<128xf32, #tpu.memory_space<any>>
    %c0_i32_16 = arith.constant 0 : i32
    %35 = tpu.memref_slice %arg6[%c3_i32_13, %c0_i32_16] : memref<8x128xf32, #tpu.memory_space<vmem>> -> memref<1x128xf32, #tpu.memory_space<vmem>>
    %36 = tpu.memref_squeeze %35 : memref<1x128xf32, #tpu.memory_space<vmem>> -> memref<128xf32, #tpu.memory_space<vmem>>
    %37 = tpu.memref_slice %arg7[%c3_i32_14] : memref<8x!tpu.dma_semaphore, #tpu.memory_space<semaphore_mem>> -> memref<1x!tpu.dma_semaphore, #tpu.memory_space<semaphore_mem>>
    %38 = tpu.memref_squeeze %37 : memref<1x!tpu.dma_semaphore, #tpu.memory_space<semaphore_mem>> -> memref<!tpu.dma_semaphore, #tpu.memory_space<semaphore_mem>>
    tpu.enqueue_dma source(%34 : memref<128xf32, #tpu.memory_space<any>>) target(%36 : memref<128xf32, #tpu.memory_space<vmem>>) target_semaphore(%38 : memref<!tpu.dma_semaphore, #tpu.memory_space<semaphore_mem>>)
    %c4_i32 = arith.constant 4 : i32
    %39 = arith.addi %2, %c4_i32 : i32
    %40 = arith.index_cast %39 : i32 to index
    %41 = memref.load %arg2[%40] : memref<16xi32, #tpu.memory_space<smem>>
    %c4_i32_17 = arith.constant 4 : i32
    %c4_i32_18 = arith.constant 4 : i32
    %c0_i32_19 = arith.constant 0 : i32
    %42 = tpu.memref_slice %arg3[%41, %c0_i32_19] : memref<64x128xf32, #tpu.memory_space<any>> -> memref<1x128xf32, #tpu.memory_space<any>>
    %43 = tpu.memref_squeeze %42 : memref<1x128xf32, #tpu.memory_space<any>> -> memref<128xf32, #tpu.memory_space<any>>
    %c0_i32_20 = arith.constant 0 : i32
    %44 = tpu.memref_slice %arg6[%c4_i32_17, %c0_i32_20] : memref<8x128xf32, #tpu.memory_space<vmem>> -> memref<1x128xf32, #tpu.memory_space<vmem>>
    %45 = tpu.memref_squeeze %44 : memref<1x128xf32, #tpu.memory_space<vmem>> -> memref<128xf32, #tpu.memory_space<vmem>>
    %46 = tpu.memref_slice %arg7[%c4_i32_18] : memref<8x!tpu.dma_semaphore, #tpu.memory_space<semaphore_mem>> -> memref<1x!tpu.dma_semaphore, #tpu.memory_space<semaphore_mem>>
    %47 = tpu.memref_squeeze %46 : memref<1x!tpu.dma_semaphore, #tpu.memory_space<semaphore_mem>> -> memref<!tpu.dma_semaphore, #tpu.memory_space<semaphore_mem>>
    tpu.enqueue_dma source(%43 : memref<128xf32, #tpu.memory_space<any>>) target(%45 : memref<128xf32, #tpu.memory_space<vmem>>) target_semaphore(%47 : memref<!tpu.dma_semaphore, #tpu.memory_space<semaphore_mem>>)
    %c5_i32 = arith.constant 5 : i32
    %48 = arith.addi %2, %c5_i32 : i32
    %49 = arith.index_cast %48 : i32 to index
    %50 = memref.load %arg2[%49] : memref<16xi32, #tpu.memory_space<smem>>
    %c5_i32_21 = arith.constant 5 : i32
    %c5_i32_22 = arith.constant 5 : i32
    %c0_i32_23 = arith.constant 0 : i32
    %51 = tpu.memref_slice %arg3[%50, %c0_i32_23] : memref<64x128xf32, #tpu.memory_space<any>> -> memref<1x128xf32, #tpu.memory_space<any>>
    %52 = tpu.memref_squeeze %51 : memref<1x128xf32, #tpu.memory_space<any>> -> memref<128xf32, #tpu.memory_space<any>>
    %c0_i32_24 = arith.constant 0 : i32
    %53 = tpu.memref_slice %arg6[%c5_i32_21, %c0_i32_24] : memref<8x128xf32, #tpu.memory_space<vmem>> -> memref<1x128xf32, #tpu.memory_space<vmem>>
    %54 = tpu.memref_squeeze %53 : memref<1x128xf32, #tpu.memory_space<vmem>> -> memref<128xf32, #tpu.memory_space<vmem>>
    %55 = tpu.memref_slice %arg7[%c5_i32_22] : memref<8x!tpu.dma_semaphore, #tpu.memory_space<semaphore_mem>> -> memref<1x!tpu.dma_semaphore, #tpu.memory_space<semaphore_mem>>
    %56 = tpu.memref_squeeze %55 : memref<1x!tpu.dma_semaphore, #tpu.memory_space<semaphore_mem>> -> memref<!tpu.dma_semaphore, #tpu.memory_space<semaphore_mem>>
    tpu.enqueue_dma source(%52 : memref<128xf32, #tpu.memory_space<any>>) target(%54 : memref<128xf32, #tpu.memory_space<vmem>>) target_semaphore(%56 : memref<!tpu.dma_semaphore, #tpu.memory_space<semaphore_mem>>)
    %c6_i32 = arith.constant 6 : i32
    %57 = arith.addi %2, %c6_i32 : i32
    %58 = arith.index_cast %57 : i32 to index
    %59 = memref.load %arg2[%58] : memref<16xi32, #tpu.memory_space<smem>>
    %c6_i32_25 = arith.constant 6 : i32
    %c6_i32_26 = arith.constant 6 : i32
    %c0_i32_27 = arith.constant 0 : i32
    %60 = tpu.memref_slice %arg3[%59, %c0_i32_27] : memref<64x128xf32, #tpu.memory_space<any>> -> memref<1x128xf32, #tpu.memory_space<any>>
    %61 = tpu.memref_squeeze %60 : memref<1x128xf32, #tpu.memory_space<any>> -> memref<128xf32, #tpu.memory_space<any>>
    %c0_i32_28 = arith.constant 0 : i32
    %62 = tpu.memref_slice %arg6[%c6_i32_25, %c0_i32_28] : memref<8x128xf32, #tpu.memory_space<vmem>> -> memref<1x128xf32, #tpu.memory_space<vmem>>
    %63 = tpu.memref_squeeze %62 : memref<1x128xf32, #tpu.memory_space<vmem>> -> memref<128xf32, #tpu.memory_space<vmem>>
    %64 = tpu.memref_slice %arg7[%c6_i32_26] : memref<8x!tpu.dma_semaphore, #tpu.memory_space<semaphore_mem>> -> memref<1x!tpu.dma_semaphore, #tpu.memory_space<semaphore_mem>>
    %65 = tpu.memref_squeeze %64 : memref<1x!tpu.dma_semaphore, #tpu.memory_space<semaphore_mem>> -> memref<!tpu.dma_semaphore, #tpu.memory_space<semaphore_mem>>
    tpu.enqueue_dma source(%61 : memref<128xf32, #tpu.memory_space<any>>) target(%63 : memref<128xf32, #tpu.memory_space<vmem>>) target_semaphore(%65 : memref<!tpu.dma_semaphore, #tpu.memory_space<semaphore_mem>>)
    %c7_i32 = arith.constant 7 : i32
    %66 = arith.addi %2, %c7_i32 : i32
    %67 = arith.index_cast %66 : i32 to index
    %68 = memref.load %arg2[%67] : memref<16xi32, #tpu.memory_space<smem>>
    %c7_i32_29 = arith.constant 7 : i32
    %c7_i32_30 = arith.constant 7 : i32
    %c0_i32_31 = arith.constant 0 : i32
    %69 = tpu.memref_slice %arg3[%68, %c0_i32_31] : memref<64x128xf32, #tpu.memory_space<any>> -> memref<1x128xf32, #tpu.memory_space<any>>
    %70 = tpu.memref_squeeze %69 : memref<1x128xf32, #tpu.memory_space<any>> -> memref<128xf32, #tpu.memory_space<any>>
    %c0_i32_32 = arith.constant 0 : i32
    %71 = tpu.memref_slice %arg6[%c7_i32_29, %c0_i32_32] : memref<8x128xf32, #tpu.memory_space<vmem>> -> memref<1x128xf32, #tpu.memory_space<vmem>>
    %72 = tpu.memref_squeeze %71 : memref<1x128xf32, #tpu.memory_space<vmem>> -> memref<128xf32, #tpu.memory_space<vmem>>
    %73 = tpu.memref_slice %arg7[%c7_i32_30] : memref<8x!tpu.dma_semaphore, #tpu.memory_space<semaphore_mem>> -> memref<1x!tpu.dma_semaphore, #tpu.memory_space<semaphore_mem>>
    %74 = tpu.memref_squeeze %73 : memref<1x!tpu.dma_semaphore, #tpu.memory_space<semaphore_mem>> -> memref<!tpu.dma_semaphore, #tpu.memory_space<semaphore_mem>>
    tpu.enqueue_dma source(%70 : memref<128xf32, #tpu.memory_space<any>>) target(%72 : memref<128xf32, #tpu.memory_space<vmem>>) target_semaphore(%74 : memref<!tpu.dma_semaphore, #tpu.memory_space<semaphore_mem>>)
    %c0_i32_33 = arith.constant 0 : i32
    %c0_i32_34 = arith.constant 0 : i32
    %c0_i32_35 = arith.constant 0 : i32
    %c0_i32_36 = arith.constant 0 : i32
    %75 = tpu.memref_slice %arg3[%c0_i32_33, %c0_i32_36] : memref<64x128xf32, #tpu.memory_space<any>> -> memref<1x128xf32, #tpu.memory_space<any>>
    %76 = tpu.memref_squeeze %75 : memref<1x128xf32, #tpu.memory_space<any>> -> memref<128xf32, #tpu.memory_space<any>>
    %c0_i32_37 = arith.constant 0 : i32
    %77 = tpu.memref_slice %arg6[%c0_i32_34, %c0_i32_37] : memref<8x128xf32, #tpu.memory_space<vmem>> -> memref<1x128xf32, #tpu.memory_space<vmem>>
    %78 = tpu.memref_squeeze %77 : memref<1x128xf32, #tpu.memory_space<vmem>> -> memref<128xf32, #tpu.memory_space<vmem>>
    %79 = tpu.memref_slice %arg7[%c0_i32_35] : memref<8x!tpu.dma_semaphore, #tpu.memory_space<semaphore_mem>> -> memref<1x!tpu.dma_semaphore, #tpu.memory_space<semaphore_mem>>
    %80 = tpu.memref_squeeze %79 : memref<1x!tpu.dma_semaphore, #tpu.memory_space<semaphore_mem>> -> memref<!tpu.dma_semaphore, #tpu.memory_space<semaphore_mem>>
    tpu.wait_dma2 semaphore(%80 : memref<!tpu.dma_semaphore, #tpu.memory_space<semaphore_mem>>) src(%76 : memref<128xf32, #tpu.memory_space<any>>) dst(%78 : memref<128xf32, #tpu.memory_space<vmem>>)
    %c0_i32_38 = arith.constant 0 : i32
    %c1_i32_39 = arith.constant 1 : i32
    %c1_i32_40 = arith.constant 1 : i32
    %c0_i32_41 = arith.constant 0 : i32
    %81 = tpu.memref_slice %arg3[%c0_i32_38, %c0_i32_41] : memref<64x128xf32, #tpu.memory_space<any>> -> memref<1x128xf32, #tpu.memory_space<any>>
    %82 = tpu.memref_squeeze %81 : memref<1x128xf32, #tpu.memory_space<any>> -> memref<128xf32, #tpu.memory_space<any>>
    %c0_i32_42 = arith.constant 0 : i32
    %83 = tpu.memref_slice %arg6[%c1_i32_39, %c0_i32_42] : memref<8x128xf32, #tpu.memory_space<vmem>> -> memref<1x128xf32, #tpu.memory_space<vmem>>
    %84 = tpu.memref_squeeze %83 : memref<1x128xf32, #tpu.memory_space<vmem>> -> memref<128xf32, #tpu.memory_space<vmem>>
    %85 = tpu.memref_slice %arg7[%c1_i32_40] : memref<8x!tpu.dma_semaphore, #tpu.memory_space<semaphore_mem>> -> memref<1x!tpu.dma_semaphore, #tpu.memory_space<semaphore_mem>>
    %86 = tpu.memref_squeeze %85 : memref<1x!tpu.dma_semaphore, #tpu.memory_space<semaphore_mem>> -> memref<!tpu.dma_semaphore, #tpu.memory_space<semaphore_mem>>
    tpu.wait_dma2 semaphore(%86 : memref<!tpu.dma_semaphore, #tpu.memory_space<semaphore_mem>>) src(%82 : memref<128xf32, #tpu.memory_space<any>>) dst(%84 : memref<128xf32, #tpu.memory_space<vmem>>)
    %c0_i32_43 = arith.constant 0 : i32
    %c2_i32_44 = arith.constant 2 : i32
    %c2_i32_45 = arith.constant 2 : i32
    %c0_i32_46 = arith.constant 0 : i32
    %87 = tpu.memref_slice %arg3[%c0_i32_43, %c0_i32_46] : memref<64x128xf32, #tpu.memory_space<any>> -> memref<1x128xf32, #tpu.memory_space<any>>
    %88 = tpu.memref_squeeze %87 : memref<1x128xf32, #tpu.memory_space<any>> -> memref<128xf32, #tpu.memory_space<any>>
    %c0_i32_47 = arith.constant 0 : i32
    %89 = tpu.memref_slice %arg6[%c2_i32_44, %c0_i32_47] : memref<8x128xf32, #tpu.memory_space<vmem>> -> memref<1x128xf32, #tpu.memory_space<vmem>>
    %90 = tpu.memref_squeeze %89 : memref<1x128xf32, #tpu.memory_space<vmem>> -> memref<128xf32, #tpu.memory_space<vmem>>
    %91 = tpu.memref_slice %arg7[%c2_i32_45] : memref<8x!tpu.dma_semaphore, #tpu.memory_space<semaphore_mem>> -> memref<1x!tpu.dma_semaphore, #tpu.memory_space<semaphore_mem>>
    %92 = tpu.memref_squeeze %91 : memref<1x!tpu.dma_semaphore, #tpu.memory_space<semaphore_mem>> -> memref<!tpu.dma_semaphore, #tpu.memory_space<semaphore_mem>>
    tpu.wait_dma2 semaphore(%92 : memref<!tpu.dma_semaphore, #tpu.memory_space<semaphore_mem>>) src(%88 : memref<128xf32, #tpu.memory_space<any>>) dst(%90 : memref<128xf32, #tpu.memory_space<vmem>>)
    %c0_i32_48 = arith.constant 0 : i32
    %c3_i32_49 = arith.constant 3 : i32
    %c3_i32_50 = arith.constant 3 : i32
    %c0_i32_51 = arith.constant 0 : i32
    %93 = tpu.memref_slice %arg3[%c0_i32_48, %c0_i32_51] : memref<64x128xf32, #tpu.memory_space<any>> -> memref<1x128xf32, #tpu.memory_space<any>>
    %94 = tpu.memref_squeeze %93 : memref<1x128xf32, #tpu.memory_space<any>> -> memref<128xf32, #tpu.memory_space<any>>
    %c0_i32_52 = arith.constant 0 : i32
    %95 = tpu.memref_slice %arg6[%c3_i32_49, %c0_i32_52] : memref<8x128xf32, #tpu.memory_space<vmem>> -> memref<1x128xf32, #tpu.memory_space<vmem>>
    %96 = tpu.memref_squeeze %95 : memref<1x128xf32, #tpu.memory_space<vmem>> -> memref<128xf32, #tpu.memory_space<vmem>>
    %97 = tpu.memref_slice %arg7[%c3_i32_50] : memref<8x!tpu.dma_semaphore, #tpu.memory_space<semaphore_mem>> -> memref<1x!tpu.dma_semaphore, #tpu.memory_space<semaphore_mem>>
    %98 = tpu.memref_squeeze %97 : memref<1x!tpu.dma_semaphore, #tpu.memory_space<semaphore_mem>> -> memref<!tpu.dma_semaphore, #tpu.memory_space<semaphore_mem>>
    tpu.wait_dma2 semaphore(%98 : memref<!tpu.dma_semaphore, #tpu.memory_space<semaphore_mem>>) src(%94 : memref<128xf32, #tpu.memory_space<any>>) dst(%96 : memref<128xf32, #tpu.memory_space<vmem>>)
    %c0_i32_53 = arith.constant 0 : i32
    %c4_i32_54 = arith.constant 4 : i32
    %c4_i32_55 = arith.constant 4 : i32
    %c0_i32_56 = arith.constant 0 : i32
    %99 = tpu.memref_slice %arg3[%c0_i32_53, %c0_i32_56] : memref<64x128xf32, #tpu.memory_space<any>> -> memref<1x128xf32, #tpu.memory_space<any>>
    %100 = tpu.memref_squeeze %99 : memref<1x128xf32, #tpu.memory_space<any>> -> memref<128xf32, #tpu.memory_space<any>>
    %c0_i32_57 = arith.constant 0 : i32
    %101 = tpu.memref_slice %arg6[%c4_i32_54, %c0_i32_57] : memref<8x128xf32, #tpu.memory_space<vmem>> -> memref<1x128xf32, #tpu.memory_space<vmem>>
    %102 = tpu.memref_squeeze %101 : memref<1x128xf32, #tpu.memory_space<vmem>> -> memref<128xf32, #tpu.memory_space<vmem>>
    %103 = tpu.memref_slice %arg7[%c4_i32_55] : memref<8x!tpu.dma_semaphore, #tpu.memory_space<semaphore_mem>> -> memref<1x!tpu.dma_semaphore, #tpu.memory_space<semaphore_mem>>
    %104 = tpu.memref_squeeze %103 : memref<1x!tpu.dma_semaphore, #tpu.memory_space<semaphore_mem>> -> memref<!tpu.dma_semaphore, #tpu.memory_space<semaphore_mem>>
    tpu.wait_dma2 semaphore(%104 : memref<!tpu.dma_semaphore, #tpu.memory_space<semaphore_mem>>) src(%100 : memref<128xf32, #tpu.memory_space<any>>) dst(%102 : memref<128xf32, #tpu.memory_space<vmem>>)
    %c0_i32_58 = arith.constant 0 : i32
    %c5_i32_59 = arith.constant 5 : i32
    %c5_i32_60 = arith.constant 5 : i32
    %c0_i32_61 = arith.constant 0 : i32
    %105 = tpu.memref_slice %arg3[%c0_i32_58, %c0_i32_61] : memref<64x128xf32, #tpu.memory_space<any>> -> memref<1x128xf32, #tpu.memory_space<any>>
    %106 = tpu.memref_squeeze %105 : memref<1x128xf32, #tpu.memory_space<any>> -> memref<128xf32, #tpu.memory_space<any>>
    %c0_i32_62 = arith.constant 0 : i32
    %107 = tpu.memref_slice %arg6[%c5_i32_59, %c0_i32_62] : memref<8x128xf32, #tpu.memory_space<vmem>> -> memref<1x128xf32, #tpu.memory_space<vmem>>
    %108 = tpu.memref_squeeze %107 : memref<1x128xf32, #tpu.memory_space<vmem>> -> memref<128xf32, #tpu.memory_space<vmem>>
    %109 = tpu.memref_slice %arg7[%c5_i32_60] : memref<8x!tpu.dma_semaphore, #tpu.memory_space<semaphore_mem>> -> memref<1x!tpu.dma_semaphore, #tpu.memory_space<semaphore_mem>>
    %110 = tpu.memref_squeeze %109 : memref<1x!tpu.dma_semaphore, #tpu.memory_space<semaphore_mem>> -> memref<!tpu.dma_semaphore, #tpu.memory_space<semaphore_mem>>
    tpu.wait_dma2 semaphore(%110 : memref<!tpu.dma_semaphore, #tpu.memory_space<semaphore_mem>>) src(%106 : memref<128xf32, #tpu.memory_space<any>>) dst(%108 : memref<128xf32, #tpu.memory_space<vmem>>)
    %c0_i32_63 = arith.constant 0 : i32
    %c6_i32_64 = arith.constant 6 : i32
    %c6_i32_65 = arith.constant 6 : i32
    %c0_i32_66 = arith.constant 0 : i32
    %111 = tpu.memref_slice %arg3[%c0_i32_63, %c0_i32_66] : memref<64x128xf32, #tpu.memory_space<any>> -> memref<1x128xf32, #tpu.memory_space<any>>
    %112 = tpu.memref_squeeze %111 : memref<1x128xf32, #tpu.memory_space<any>> -> memref<128xf32, #tpu.memory_space<any>>
    %c0_i32_67 = arith.constant 0 : i32
    %113 = tpu.memref_slice %arg6[%c6_i32_64, %c0_i32_67] : memref<8x128xf32, #tpu.memory_space<vmem>> -> memref<1x128xf32, #tpu.memory_space<vmem>>
    %114 = tpu.memref_squeeze %113 : memref<1x128xf32, #tpu.memory_space<vmem>> -> memref<128xf32, #tpu.memory_space<vmem>>
    %115 = tpu.memref_slice %arg7[%c6_i32_65] : memref<8x!tpu.dma_semaphore, #tpu.memory_space<semaphore_mem>> -> memref<1x!tpu.dma_semaphore, #tpu.memory_space<semaphore_mem>>
    %116 = tpu.memref_squeeze %115 : memref<1x!tpu.dma_semaphore, #tpu.memory_space<semaphore_mem>> -> memref<!tpu.dma_semaphore, #tpu.memory_space<semaphore_mem>>
    tpu.wait_dma2 semaphore(%116 : memref<!tpu.dma_semaphore, #tpu.memory_space<semaphore_mem>>) src(%112 : memref<128xf32, #tpu.memory_space<any>>) dst(%114 : memref<128xf32, #tpu.memory_space<vmem>>)
    %c0_i32_68 = arith.constant 0 : i32
    %c7_i32_69 = arith.constant 7 : i32
    %c7_i32_70 = arith.constant 7 : i32
    %c0_i32_71 = arith.constant 0 : i32
    %117 = tpu.memref_slice %arg3[%c0_i32_68, %c0_i32_71] : memref<64x128xf32, #tpu.memory_space<any>> -> memref<1x128xf32, #tpu.memory_space<any>>
    %118 = tpu.memref_squeeze %117 : memref<1x128xf32, #tpu.memory_space<any>> -> memref<128xf32, #tpu.memory_space<any>>
    %c0_i32_72 = arith.constant 0 : i32
    %119 = tpu.memref_slice %arg6[%c7_i32_69, %c0_i32_72] : memref<8x128xf32, #tpu.memory_space<vmem>> -> memref<1x128xf32, #tpu.memory_space<vmem>>
    %120 = tpu.memref_squeeze %119 : memref<1x128xf32, #tpu.memory_space<vmem>> -> memref<128xf32, #tpu.memory_space<vmem>>
    %121 = tpu.memref_slice %arg7[%c7_i32_70] : memref<8x!tpu.dma_semaphore, #tpu.memory_space<semaphore_mem>> -> memref<1x!tpu.dma_semaphore, #tpu.memory_space<semaphore_mem>>
    %122 = tpu.memref_squeeze %121 : memref<1x!tpu.dma_semaphore, #tpu.memory_space<semaphore_mem>> -> memref<!tpu.dma_semaphore, #tpu.memory_space<semaphore_mem>>
    tpu.wait_dma2 semaphore(%122 : memref<!tpu.dma_semaphore, #tpu.memory_space<semaphore_mem>>) src(%118 : memref<128xf32, #tpu.memory_space<any>>) dst(%120 : memref<128xf32, #tpu.memory_space<vmem>>)
    %c0 = arith.constant 0 : index
    %c0_73 = arith.constant 0 : index
    %123 = vector.load %arg6[%c0, %c0_73] : memref<8x128xf32, #tpu.memory_space<vmem>>, vector<8x128xf32>
    %c0_74 = arith.constant 0 : index
    %c0_75 = arith.constant 0 : index
    %124 = vector.load %arg4[%c0_74, %c0_75] : memref<8x128xf32, #tpu.memory_space<vmem>>, vector<8x128xf32>
    %125 = arith.addf %123, %124 : vector<8x128xf32>
    %c0_76 = arith.constant 0 : index
    %c0_77 = arith.constant 0 : index
    %c0_78 = arith.constant 0 : index
    %126 = vector.load %arg5[%c0_76, %c0_77, %c0_78] : memref<1x8x128xf32, #tpu.memory_space<vmem>>, vector<1x8x128xf32>
    %127 = vector.shape_cast %126 : vector<1x8x128xf32> to vector<8x128xf32>
    %128 = vector.shape_cast %125 : vector<8x128xf32> to vector<1x8x128xf32>
    tpu.vector_store %arg5[%c0_76, %c0_77, %c0_78], %128 {strides = array<i32>} : memref<1x8x128xf32, #tpu.memory_space<vmem>>, vector<1x8x128xf32>,
    return
  }
  func.func @transform_1(%arg0: i32, %arg1: i32, %arg2: memref<16xi32, #tpu.memory_space<smem>>) -> (i32, i32) {
    %c0_i32 = arith.constant 0 : i32
    %c0_i32_0 = arith.constant 0 : i32
    return %arg1, %c0_i32 : i32, i32
  }
  func.func @transform_2(%arg0: i32, %arg1: i32, %arg2: memref<16xi32, #tpu.memory_space<smem>>) -> (i32, i32, i32) {
    %c0_i32 = arith.constant 0 : i32
    %c0_i32_0 = arith.constant 0 : i32
    return %arg0, %arg1, %c0_i32 : i32, i32, i32
  }
}

</mosaic_0001>

<llo_original>
// kernel: tpu_custom_call.1
$region0: #{tpu_custom_call.1}
  #allocation0 [shape = 'u32[]', space=smem, size = 0x4, offset = 0x4, fixed_abs, tag = 'smem constant byte address 0x4 - core index']
  #allocation1 [shape = 'u32[72,128]{1,0:T(1,128)}', space=vmem, size = 0x9000, scoped, tag = 'internal scratch']
  #allocation2 [shape = 'f32[8,128]{1,0:T(8,128)}', space=vmem, size = 0x1000, scoped, tag = 'scratch operand']
  #allocation3 [shape = 's32[8]{0}', space=sflag, size = 0x20, scoped, tag = 'scratch operand']
  #allocation4 [shape = 's32[1]{0}', space=sflag, size = 0x4, scoped, tag = 'scoped memory for tpu_custom_call.1']
  #allocation5 [shape = 'u8[512]{0}', space=smem, size = 0x200, scoped, tag = 'prefetched SMEM operand 0']
  #allocation10 [shape = 's32[]', space=sflag, size = 0x4, offset = 0, fixed_abs, tag = 'sflag constant byte address 0x0 - dummy sync flag']
  #allocation11 [shape = 's32[]', space=sflag, size = 0x4, offset = 0, fixed_abs, tag = 'sflag constant byte address 0x0 - dummy sync flag']
  #allocation12 [shape = 'u32[]', space=smem, size = 0x4, offset = 0x44, fixed_abs, tag = 'smem constant byte address 0x44 - assertion arg 0']
  #allocation13 [shape = 'u32[]', space=smem, size = 0x4, offset = 0x48, fixed_abs, tag = 'smem constant byte address 0x48 - assertion arg 1']
  #allocation14 [shape = 's32[]', space=sflag, size = 0x4, offset = 0, fixed_abs, tag = 'sflag constant byte address 0x0 - dummy sync flag']
  #allocation15 [shape = 's32[]', space=sflag, size = 0x4, offset = 0, fixed_abs, tag = 'sflag constant byte address 0x0 - dummy sync flag']
  #allocation16 [shape = 's32[]', space=sflag, size = 0x4, offset = 0, fixed_abs, tag = 'sflag constant byte address 0x0 - dummy sync flag']
  #allocation17 [shape = 's32[]', space=sflag, size = 0x4, offset = 0, fixed_abs, tag = 'sflag constant byte address 0x0 - dummy sync flag']
  #allocation18 [shape = 's32[]', space=sflag, size = 0x4, offset = 0, fixed_abs, tag = 'sflag constant byte address 0x0 - dummy sync flag']
  #allocation19 [shape = 's32[]', space=sflag, size = 0x4, offset = 0, fixed_abs, tag = 'sflag constant byte address 0x0 - dummy sync flag']
  #allocation20 [shape = 's32[]', space=sflag, size = 0x4, offset = 0, fixed_abs, tag = 'sflag constant byte address 0x0 - dummy sync flag']
  #allocation21 [shape = 's32[]', space=sflag, size = 0x4, offset = 0, fixed_abs, tag = 'sflag constant byte address 0x0 - dummy sync flag']
  #allocation22 [shape = 's32[]', space=sflag, size = 0x4, offset = 0, fixed_abs, tag = 'sflag constant byte address 0x0 - dummy sync flag']
  #allocation23 [shape = 's32[]', space=sflag, size = 0x4, offset = 0, fixed_abs, tag = 'sflag constant byte address 0x0 - dummy sync flag']
  #allocation24 [shape = 's32[]', space=sflag, size = 0x4, offset = 0, fixed_abs, tag = 'sflag constant byte address 0x0 - dummy sync flag']
  #allocation25 [shape = 's32[]', space=sflag, size = 0x4, offset = 0, fixed_abs, tag = 'sflag constant byte address 0x0 - dummy sync flag']
  #allocation26 [shape = 's32[]', space=sflag, size = 0x4, offset = 0, fixed_abs, tag = 'sflag constant byte address 0x0 - dummy sync flag']
  #allocation27 [shape = 's32[]', space=sflag, size = 0x4, offset = 0, fixed_abs, tag = 'sflag constant byte address 0x0 - dummy sync flag']
  %s0 = inlined_call_operand.hbm [shape: s32[16], index: 0, kind: input, shape index: {}]
  %s1 = inlined_call_operand.hbm [shape: f32[64,128], index: 1, kind: input, shape index: {}]
  %s2 = inlined_call_operand.hbm [shape: f32[8,128], index: 2, kind: input, shape index: {}]
  %s3 = inlined_call_operand.hbm [shape: f32[2,8,128], index: 3, kind: output, shape index: {}]
  %s4 = sld [smem:[#allocation0]]
  $region73: #{tpu_custom_call.1} parent=0
    _
  %s6 = ssub.s32 1, %s4
  %s7 = scalar_select 0, %s6, %s4
  %s9 = sshll.u32 %s0, 4
  %s10 = int_to_ptr.hbm [resolvable:$true] %s9
  %12 = dma.hbm_to_smem %s10, 16, [#allocation5], [#allocation4]
  %14 = dma.done [#allocation4], 16
  %15 = sfence
  $region1: #{tpu_custom_call.1} parent=0
    #allocation6 [shape = 'u8[4096]{0}', space=vmem, size = 0x1000, scoped, tag = 'input window, operand 2, single buffered']
    #allocation7 [shape = 's32[2]{0}', space=sflag, size = 0x8, scoped, tag = 'scoped memory for tpu_custom_call.1']
    #allocation8 [shape = 's32[2]{0}', space=sflag, size = 0x8, scoped, tag = 'scoped memory for tpu_custom_call.1']
    #allocation9 [shape = 'u8[8192]{0}', space=vmem, size = 0x2000, scoped, tag = 'output window, operand 0']
    %16 = vsyncpa [#allocation7], 0
    %17 = vsyncpa [#allocation8], 0
    %s18 = scalar_lea.sflag [#allocation8], 1
    %19 = vsyncpa %s18, 0
    loop: start=0, step=1, limit=4
    $region2: #{tpu_custom_call.1} parent=1 // loop_pre_header
      _
    $region3: #{tpu_custom_call.1} parent=1 // loop_header
      %s21 = sphi 0, %s25
      %p22 = scmp.ge.s32.totalorder %s21, 4
      %s28 = sphi 0, %s40
      %s29 = sphi 0, %s36
      %s30 = sphi 0, %s28
      %s31 = sphi 0, %s29
      %s32 = sphi 0, %s30
      %s33 = sphi 0, %s31
      %s43 = sphi 0, %s45
      %s46 = sphi 0, %s43
      %s47 = sphi 0, %s46
      %s63 = sphi 0, %s47
      %s71 = sphi 0, %s73
      %s74 = sphi 0, %s71
      %s75 = sphi 0, %s74
      %s91 = sphi 0, %s75
    $region4: #{tpu_custom_call.1} parent=1 // loop_header_branch
      %24 = sbr.rel (%p22) target = $region8
    $region5: #{tpu_custom_call.1} parent=1 // loop_body
      %s26 = ssub.s32 %s21, 1
      %s27 = ssub.s32 %s21, 2
      %s34 = sadd.s32 1, %s29
      %p35 = scmp.ge.s32.totalorder %s34, 1
      %s36 = scalar_select %p35, 0, %s34
      %s37 = sadd.s32 1, %s28
      %s38 = scalar_select %p35, %s37, %s28
      %p39 = scmp.ge.s32.totalorder %s38, 2
      %s40 = scalar_select %p39, 0, %s38
      %s41 = ssub.s32 %s29, %s36
      %p42 = scmp.eq.s32.totalorder %s41, 0
      %s44 = sadd.s32 %s43, 1
      %s45 = scalar_select %p42, %s43, %s44
      %p48 = pneg %p42
      %p49 = scmp.eq.s32.totalorder %s21, 1
      %p50 = por %p48, %p49
      %p51 = scmp.ne.s32.totalorder %s43, %s46
      %p52 = scmp.eq.s32.totalorder %s21, 0
      %p53 = por %p51, %p52
      %p54 = scmp.ne.s32.totalorder %s43, %s46
      %p55 = scmp.eq.s32.totalorder %s26, 1
      %p56 = por %p54, %p55
      %p57 = scmp.ne.s32.totalorder %s46, %s47
      %p58 = scmp.eq.s32.totalorder %s26, 0
      %p59 = por %p57, %p58
      %p60 = scmp.ne.s32.totalorder %s46, %s47
      %p61 = scmp.eq.s32.totalorder %s27, 1
      %p62 = por %p60, %p61
      %p64 = scmp.ne.s32.totalorder %s47, %s63
      %p65 = scmp.eq.s32.totalorder %s27, 0
      %p66 = por %p64, %p65
      %s67 = ssub.s32 %s28, %s40
      %s68 = ssub.s32 %s29, %s36
      %s69 = sor.u32 %s67, %s68
      %p70 = scmp.eq.s32.totalorder %s69, 0
      %s72 = sadd.s32 %s71, 1
      %s73 = scalar_select %p70, %s71, %s72
      %p76 = pneg %p70
      %p77 = scmp.eq.s32.totalorder %s21, 1
      %p78 = por %p76, %p77
      %p79 = scmp.ne.s32.totalorder %s71, %s74
      %p80 = scmp.eq.s32.totalorder %s21, 0
      %p81 = por %p79, %p80
      %p82 = scmp.ne.s32.totalorder %s71, %s74
      %p83 = scmp.eq.s32.totalorder %s26, 1
      %p84 = por %p82, %p83
      %p85 = scmp.ne.s32.totalorder %s74, %s75
      %p86 = scmp.eq.s32.totalorder %s26, 0
      %p87 = por %p85, %p86
      %p88 = scmp.ne.s32.totalorder %s74, %s75
      %p89 = scmp.eq.s32.totalorder %s27, 1
      %p90 = por %p88, %p89
      %p92 = scmp.ne.s32.totalorder %s75, %s91
      %p93 = scmp.eq.s32.totalorder %s27, 0
      %p94 = por %p92, %p93
      %p95 = scmp.le.s32.totalorder 1, %s21
      %p96 = scmp.lt.s32.totalorder %s21, 3
      %p97 = pnand %p95, %p96
      %p98 = pneg %p97
      // Predicated region
      $region9: #{tpu_custom_call.1} parent=5 // pred_check
        _
      $region10: #{tpu_custom_call.1} parent=5 // pred_check_branch
        %100 = sbr.rel (%p97) target = $region12
      $region11: #{tpu_custom_call.1} parent=5 // pred_region
        %s101 = ssub.s32 %s21, 1
        // Predicated region
        $region13: #{tpu_custom_call.1} parent=11 // pred_check
          %p102 = pneg %p59
        $region14: #{tpu_custom_call.1} parent=11 // pred_check_branch
          %104 = sbr.rel (%p102) target = $region16
        $region15: #{tpu_custom_call.1} parent=11 // pred_region
          %106 = vsyncadd [#allocation7], 0
          %s107 = smul.addr %s31, 8
          %s108 = scalar_lea.hbm %s2, %s107
          %s110 = sshll.u32 %s108, 4
          %s111 = int_to_ptr.hbm [resolvable:$true] %s110
          %s112 = sshll.u32 [#allocation6], 4
          %s113 = int_to_ptr.vmem [resolvable:$true] %s112
          %115 = dma.hbm_to_vmem [thread:$0]  %s111, 128, %s113, [#allocation7]
        $region16: #{tpu_custom_call.1} parent=11 // pred_fallthru
          _
      $region12: #{tpu_custom_call.1} parent=5 // pred_fallthru
        _
      %p116 = scmp.lt.s32.totalorder %s21, 2
      // Predicated region
      $region17: #{tpu_custom_call.1} parent=5 // pred_check
        %p117 = pneg %p116
      $region18: #{tpu_custom_call.1} parent=5 // pred_check_branch
        %119 = sbr.rel (%p117) target = $region20
      $region19: #{tpu_custom_call.1} parent=5 // pred_region
        _
      $region20: #{tpu_custom_call.1} parent=5 // pred_fallthru
        _
      %p120 = scmp.le.s32.totalorder 1, %s21
      %p121 = scmp.lt.s32.totalorder %s21, 3
      %p122 = pnand %p120, %p121
      %p123 = pneg %p122
      // Predicated region
      $region21: #{tpu_custom_call.1} parent=5 // pred_check
        _
      $region22: #{tpu_custom_call.1} parent=5 // pred_check_branch
        %125 = sbr.rel (%p122) target = $region24
      $region23: #{tpu_custom_call.1} parent=5 // pred_region
        %s126 = ssub.s32 %s21, 1
        // Predicated region
        $region25: #{tpu_custom_call.1} parent=23 // pred_check
          %p127 = pneg %p59
        $region26: #{tpu_custom_call.1} parent=23 // pred_check_branch
          %129 = sbr.rel (%p127) target = $region28
        $region27: #{tpu_custom_call.1} parent=23 // pred_region
          %131 = dma.done [#allocation7], 128
        $region28: #{tpu_custom_call.1} parent=23 // pred_fallthru
          _
        %p132 = pneg %p59
        %p133 = pneg %p56
        %p134 = pneg %p87
        %p135 = pneg %p84
        %s136 = sand.u32 %s74, 1
        %s137 = scalar_lea.sflag [#allocation8], %s136
        %s138 = sand.u32 %s74, 1
        %s139 = smul.addr %s138, 8
        %s140 = scalar_lea.vmem [#allocation9], %s139
        %s141 = smul.u32 %s30, 8
        %s142 = smul.u32 %s31, 8
        %s143 = sadd.s32 %s141, %s142
        %s144 = sld [smem:[#allocation5 + %s143]]
        %s145 = scalar_lea.hbm %s1, %s144
        // Predicated region
        $region29: #{tpu_custom_call.1} parent=23 // pred_check
          _
        $region30: #{tpu_custom_call.1} parent=23 // pred_check_branch
          %147 = sbr.rel target = $region32
        $region31: #{tpu_custom_call.1} parent=23 // pred_region
          %148 = sst [smem:[#allocation12]] [#allocation11]
          %149 = sst [smem:[#allocation13]] [#allocation10]
        $region32: #{tpu_custom_call.1} parent=23 // pred_fallthru
          _
        %151 = shalt.err (0)
        %s153 = sshll.u32 %s145, 4
        %s154 = int_to_ptr.hbm [resolvable:$true] %s153
        %s155 = sshll.u32 [#allocation2], 4
        %s156 = int_to_ptr.vmem [resolvable:$true] %s155
        %158 = dma.hbm_to_vmem [thread:$0]  %s154, 16, %s156, [#allocation3]
        %s159 = sadd.s32 %s143, 1
        %s160 = sld [smem:[#allocation5 + %s159]]
        %s161 = scalar_lea.hbm %s1, %s160
        %s162 = scalar_lea.vmem [#allocation2], 1
        %s163 = scalar_lea.sflag [#allocation3], 1
        // Predicated region
        $region33: #{tpu_custom_call.1} parent=23 // pred_check
          _
        $region34: #{tpu_custom_call.1} parent=23 // pred_check_branch
          %165 = sbr.rel target = $region36
        $region35: #{tpu_custom_call.1} parent=23 // pred_region
          %166 = sst [smem:[#allocation12]] [#allocation15]
          %167 = sst [smem:[#allocation13]] [#allocation14]
        $region36: #{tpu_custom_call.1} parent=23 // pred_fallthru
          _
        %169 = shalt.err (0)
        %s171 = sshll.u32 %s161, 4
        %s172 = int_to_ptr.hbm [resolvable:$true] %s171
        %s173 = sshll.u32 %s162, 4
        %s174 = int_to_ptr.vmem [resolvable:$true] %s173
        %176 = dma.hbm_to_vmem [thread:$0]  %s172, 16, %s174, %s163
        %s177 = sadd.s32 %s143, 2
        %s178 = sld [smem:[#allocation5 + %s177]]
        %s179 = scalar_lea.hbm %s1, %s178
        %s180 = scalar_lea.vmem [#allocation2], 2
        %s181 = scalar_lea.sflag [#allocation3], 2
        // Predicated region
        $region37: #{tpu_custom_call.1} parent=23 // pred_check
          _
        $region38: #{tpu_custom_call.1} parent=23 // pred_check_branch
          %183 = sbr.rel target = $region40
        $region39: #{tpu_custom_call.1} parent=23 // pred_region
          %184 = sst [smem:[#allocation12]] [#allocation17]
          %185 = sst [smem:[#allocation13]] [#allocation16]
        $region40: #{tpu_custom_call.1} parent=23 // pred_fallthru
          _
        %187 = shalt.err (0)
        %s189 = sshll.u32 %s179, 4
        %s190 = int_to_ptr.hbm [resolvable:$true] %s189
        %s191 = sshll.u32 %s180, 4
        %s192 = int_to_ptr.vmem [resolvable:$true] %s191
        %194 = dma.hbm_to_vmem [thread:$0]  %s190, 16, %s192, %s181
        %s195 = sadd.s32 %s143, 3
        %s196 = sld [smem:[#allocation5 + %s195]]
        %s197 = scalar_lea.hbm %s1, %s196
        %s198 = scalar_lea.vmem [#allocation2], 3
        %s199 = scalar_lea.sflag [#allocation3], 3
        // Predicated region
        $region41: #{tpu_custom_call.1} parent=23 // pred_check
          _
        $region42: #{tpu_custom_call.1} parent=23 // pred_check_branch
          %201 = sbr.rel target = $region44
        $region43: #{tpu_custom_call.1} parent=23 // pred_region
          %202 = sst [smem:[#allocation12]] [#allocation19]
          %203 = sst [smem:[#allocation13]] [#allocation18]
        $region44: #{tpu_custom_call.1} parent=23 // pred_fallthru
          _
        %205 = shalt.err (0)
        %s207 = sshll.u32 %s197, 4
        %s208 = int_to_ptr.hbm [resolvable:$true] %s207
        %s209 = sshll.u32 %s198, 4
        %s210 = int_to_ptr.vmem [resolvable:$true] %s209
        %212 = dma.hbm_to_vmem [thread:$0]  %s208, 16, %s210, %s199
        %s213 = sadd.s32 %s143, 4
        %s214 = sld [smem:[#allocation5 + %s213]]
        %s215 = scalar_lea.hbm %s1, %s214
        %s216 = scalar_lea.vmem [#allocation2], 4
        %s217 = scalar_lea.sflag [#allocation3], 4
        // Predicated region
        $region45: #{tpu_custom_call.1} parent=23 // pred_check
          _
        $region46: #{tpu_custom_call.1} parent=23 // pred_check_branch
          %219 = sbr.rel target = $region48
        $region47: #{tpu_custom_call.1} parent=23 // pred_region
          %220 = sst [smem:[#allocation12]] [#allocation21]
          %221 = sst [smem:[#allocation13]] [#allocation20]
        $region48: #{tpu_custom_call.1} parent=23 // pred_fallthru
          _
        %223 = shalt.err (0)
        %s225 = sshll.u32 %s215, 4
        %s226 = int_to_ptr.hbm [resolvable:$true] %s225
        %s227 = sshll.u32 %s216, 4
        %s228 = int_to_ptr.vmem [resolvable:$true] %s227
        %230 = dma.hbm_to_vmem [thread:$0]  %s226, 16, %s228, %s217
        %s231 = sadd.s32 %s143, 5
        %s232 = sld [smem:[#allocation5 + %s231]]
        %s233 = scalar_lea.hbm %s1, %s232
        %s234 = scalar_lea.vmem [#allocation2], 5
        %s235 = scalar_lea.sflag [#allocation3], 5
        // Predicated region
        $region49: #{tpu_custom_call.1} parent=23 // pred_check
          _
        $region50: #{tpu_custom_call.1} parent=23 // pred_check_branch
          %237 = sbr.rel target = $region52
        $region51: #{tpu_custom_call.1} parent=23 // pred_region
          %238 = sst [smem:[#allocation12]] [#allocation23]
          %239 = sst [smem:[#allocation13]] [#allocation22]
        $region52: #{tpu_custom_call.1} parent=23 // pred_fallthru
          _
        %241 = shalt.err (0)
        %s243 = sshll.u32 %s233, 4
        %s244 = int_to_ptr.hbm [resolvable:$true] %s243
        %s245 = sshll.u32 %s234, 4
        %s246 = int_to_ptr.vmem [resolvable:$true] %s245
        %248 = dma.hbm_to_vmem [thread:$0]  %s244, 16, %s246, %s235
        %s249 = sadd.s32 %s143, 6
        %s250 = sld [smem:[#allocation5 + %s249]]
        %s251 = scalar_lea.hbm %s1, %s250
        %s252 = scalar_lea.vmem [#allocation2], 6
        %s253 = scalar_lea.sflag [#allocation3], 6
        // Predicated region
        $region53: #{tpu_custom_call.1} parent=23 // pred_check
          _
        $region54: #{tpu_custom_call.1} parent=23 // pred_check_branch
          %255 = sbr.rel target = $region56
        $region55: #{tpu_custom_call.1} parent=23 // pred_region
          %256 = sst [smem:[#allocation12]] [#allocation25]
          %257 = sst [smem:[#allocation13]] [#allocation24]
        $region56: #{tpu_custom_call.1} parent=23 // pred_fallthru
          _
        %259 = shalt.err (0)
        %s261 = sshll.u32 %s251, 4
        %s262 = int_to_ptr.hbm [resolvable:$true] %s261
        %s263 = sshll.u32 %s252, 4
        %s264 = int_to_ptr.vmem [resolvable:$true] %s263
        %266 = dma.hbm_to_vmem [thread:$0]  %s262, 16, %s264, %s253
        %s267 = sadd.s32 %s143, 7
        %s268 = sld [smem:[#allocation5 + %s267]]
        %s269 = scalar_lea.hbm %s1, %s268
        %s270 = scalar_lea.vmem [#allocation2], 7
        %s271 = scalar_lea.sflag [#allocation3], 7
        // Predicated region
        $region57: #{tpu_custom_call.1} parent=23 // pred_check
          _
        $region58: #{tpu_custom_call.1} parent=23 // pred_check_branch
          %273 = sbr.rel target = $region60
        $region59: #{tpu_custom_call.1} parent=23 // pred_region
          %274 = sst [smem:[#allocation12]] [#allocation27]
          %275 = sst [smem:[#allocation13]] [#allocation26]
        $region60: #{tpu_custom_call.1} parent=23 // pred_fallthru
          _
        %277 = shalt.err (0)
        %s279 = sshll.u32 %s269, 4
        %s280 = int_to_ptr.hbm [resolvable:$true] %s279
        %s281 = sshll.u32 %s270, 4
        %s282 = int_to_ptr.vmem [resolvable:$true] %s281
        %284 = dma.hbm_to_vmem [thread:$0]  %s280, 16, %s282, %s271
        %286 = dma.done [#allocation3], 16
        %288 = dma.done %s163, 16
        %290 = dma.done %s181, 16
        %292 = dma.done %s199, 16
        %294 = dma.done %s217, 16
        %296 = dma.done %s235, 16
        %298 = dma.done %s253, 16
        %300 = dma.done %s271, 16
        %v301 = vld [vmem:[#allocation2] sm:$0xff]
        %v302 = vld [vmem:[#allocation6] sm:$0xff]
        %v303 = vadd.f32 %v301, %v302
        %304 = vst [vmem:[%s140] sm:$0xff] %v303
        %s305 = sand.u32 %s74, 1
        %s306 = scalar_lea.sflag [#allocation8], %s305
        %s307 = sand.u32 %s74, 1
        %s308 = smul.addr %s307, 8
        %s309 = scalar_lea.vmem [#allocation9], %s308
        // Predicated region
        $region61: #{tpu_custom_call.1} parent=23 // pred_check
          %p310 = pneg %p84
        $region62: #{tpu_custom_call.1} parent=23 // pred_check_branch
          %312 = sbr.rel (%p310) target = $region64
        $region63: #{tpu_custom_call.1} parent=23 // pred_region
          %314 = vsyncadd %s306, 0
          %s315 = sadd.s32 %s31, %s30
          %s316 = smul.addr %s315, 8
          %s317 = scalar_lea.hbm %s3, %s316
          %s319 = sshll.u32 %s309, 4
          %s320 = int_to_ptr.vmem [resolvable:$true] %s319
          %s321 = sshll.u32 %s317, 4
          %s322 = int_to_ptr.hbm [resolvable:$true] %s321
          %324 = dma.vmem_to_hbm [thread:$0]  %s320, 128, %s322, %s306
        $region64: #{tpu_custom_call.1} parent=23 // pred_fallthru
          _
      $region24: #{tpu_custom_call.1} parent=5 // pred_fallthru
        _
      %p325 = scmp.le.s32.totalorder 2, %s21
      // Predicated region
      $region65: #{tpu_custom_call.1} parent=5 // pred_check
        %p326 = pneg %p325
      $region66: #{tpu_custom_call.1} parent=5 // pred_check_branch
        %328 = sbr.rel (%p326) target = $region68
      $region67: #{tpu_custom_call.1} parent=5 // pred_region
        %s329 = ssub.s32 %s21, 2
        // Predicated region
        $region69: #{tpu_custom_call.1} parent=67 // pred_check
          %p330 = pneg %p90
        $region70: #{tpu_custom_call.1} parent=67 // pred_check_branch
          %332 = sbr.rel (%p330) target = $region72
        $region71: #{tpu_custom_call.1} parent=67 // pred_region
          %s333 = sand.u32 %s75, 1
          %s334 = scalar_lea.sflag [#allocation8], %s333
          %s335 = sand.u32 %s75, 1
          %s336 = smul.addr %s335, 8
          %s337 = scalar_lea.vmem [#allocation9], %s336
          %339 = dma.done %s334, 128
        $region72: #{tpu_custom_call.1} parent=67 // pred_fallthru
          _
      $region68: #{tpu_custom_call.1} parent=5 // pred_fallthru
        _
    $region6: #{tpu_custom_call.1} parent=1 // loop_footer
      %s25 = sadd.s32 1, %s21
    $region7: #{tpu_custom_call.1} parent=1 // loop_footer_branch
      %20 = sbr.rel target = $region3
    $region8: #{tpu_custom_call.1} parent=1 // loop_exit
      _
    %340 = vsyncpa [#allocation7], 1
    %s341 = scalar_lea.sflag [#allocation7], 1
    %342 = vsyncpa %s341, 1
    %343 = vsyncpa [#allocation8], 1
    %s344 = scalar_lea.sflag [#allocation8], 1
    %345 = vsyncpa %s344, 1
  %346 = vsyncmov [#allocation3]
  %s347 = vpop.sfrf %346
  %p348 = scmp.eq.s32.totalorder %s347, 0
  %p349 = pneg %p348
  %351 = shalt.err (%p349)
  %s352 = scalar_lea.sflag [#allocation3], 1
  %353 = vsyncmov %s352
  %s354 = vpop.sfrf %353
  %p355 = scmp.eq.s32.totalorder %s354, 0
  %p356 = pneg %p355
  %358 = shalt.err (%p356)
  %s359 = scalar_lea.sflag [#allocation3], 2
  %360 = vsyncmov %s359
  %s361 = vpop.sfrf %360
  %p362 = scmp.eq.s32.totalorder %s361, 0
  %p363 = pneg %p362
  %365 = shalt.err (%p363)
  %s366 = scalar_lea.sflag [#allocation3], 3
  %367 = vsyncmov %s366
  %s368 = vpop.sfrf %367
  %p369 = scmp.eq.s32.totalorder %s368, 0
  %p370 = pneg %p369
  %372 = shalt.err (%p370)
  %s373 = scalar_lea.sflag [#allocation3], 4
  %374 = vsyncmov %s373
  %s375 = vpop.sfrf %374
  %p376 = scmp.eq.s32.totalorder %s375, 0
  %p377 = pneg %p376
  %379 = shalt.err (%p377)
  %s380 = scalar_lea.sflag [#allocation3], 5
  %381 = vsyncmov %s380
  %s382 = vpop.sfrf %381
  %p383 = scmp.eq.s32.totalorder %s382, 0
  %p384 = pneg %p383
  %386 = shalt.err (%p384)
  %s387 = scalar_lea.sflag [#allocation3], 6
  %388 = vsyncmov %s387
  %s389 = vpop.sfrf %388
  %p390 = scmp.eq.s32.totalorder %s389, 0
  %p391 = pneg %p390
  %393 = shalt.err (%p391)
  %s394 = scalar_lea.sflag [#allocation3], 7
  %395 = vsyncmov %s394
  %s396 = vpop.sfrf %395
  %p397 = scmp.eq.s32.totalorder %s396, 0
  %p398 = pneg %p397
  %400 = shalt.err (%p398)

</llo_original>
